<compile_context>
chip_gen: v7x
topology: tpu7x:2x2x1
jax: 0.10.0
libtpu: 0.0.40
codegen_flags: <defaults>
</compile_context>

<pallas_src>
import jax
import jax.numpy as jnp
from jax import lax
from jax.experimental import pallas as pl
from jax.experimental.pallas import tpu as pltpu


def _round_up(x, m):
    return (x + m - 1) // m * m


def _dist_linear_kernel(x_ref, v_ref, row_ref, col_ref, o_ref):
    # Raw scores on the MXU: contract D on both operands (no transpose),
    # bf16 operands streamed from HBM, f32 accumulation.
    raw = lax.dot_general(
        x_ref[...], v_ref[...],
        dimension_numbers=(((1,), (1,)), ((), ())),
        preferred_element_type=jnp.float32,
    )                                                    # [TB, TO] f32
    # Fold both normalizations + scale into the small [TB, TO] result.
    o_ref[...] = raw * row_ref[...] * col_ref[...]       # [TB,1] and [1,TO] bcast


def dist_linear(x, weight_v, weight_g):
    """x: [B, indim], weight_v: [outdim, indim], weight_g: [outdim, 1]."""
    B, D = x.shape
    O = weight_v.shape[0]
    scale_factor = 2.0 if O <= 200 else 10.0

    # ---- wrapper-side scale vectors (f32, computed BEFORE any bf16 cast) ----
    x32 = x.astype(jnp.float32)
    x_norm = jnp.sqrt(jnp.sum(x32 * x32, axis=1, keepdims=True))        # [B,1]
    row_scale = scale_factor / (x_norm + 1e-5)                          # [B,1]

    v32 = weight_v.astype(jnp.float32)
    v_norm = jnp.sqrt(jnp.sum(v32 * v32, axis=1, keepdims=True))        # [O,1]
    col_scale = jnp.where(v_norm > 0,
                          weight_g.astype(jnp.float32) / v_norm, 0.0)
    col_scale = col_scale.reshape(1, O)                                 # [1,O]

    # ---- generation-aware VMEM budgets ----
    try:
        vmem_phys = int(getattr(pltpu.get_tpu_info(), "vmem_capacity_bytes",
                                64 * 1024 * 1024))
    except Exception:
        vmem_phys = 64 * 1024 * 1024
    if vmem_phys >= 96 * 1024 * 1024:          # v5e / v6e: 128 MiB per TC
        w_tile_budget = 10 * 1024 * 1024
        vmem_ceiling = 64 * 1024 * 1024
    else:                                       # v7x: 64 MiB per TC
        w_tile_budget = 4 * 1024 * 1024
        vmem_ceiling = 36 * 1024 * 1024

    # ---- padding / tile selection (lane-dense, bf16-aware) ----
    d_pad = _round_up(D, 128)

    tile_b = _round_up(min(B, 512), 8)
    b_pad = _round_up(B, tile_b)
    n_b = b_pad // tile_b

    o128 = _round_up(O, 128)
    rows_cap = max(128, (w_tile_budget // (2 * d_pad)) // 128 * 128)
    tile_o = min(o128, 2048, rows_cap)
    if tile_o < o128 and tile_o >= 256:
        tile_o = tile_o // 256 * 256            # MXU-width multiple when streaming
    if n_b == 1 and o128 >= 256 and _round_up(O, tile_o) // tile_o < 2:
        # v7x megacore: keep >= 2 steps on a parallel grid axis.
        tile_o = _round_up(o128 // 2, 128)
    o_pad = _round_up(O, tile_o)
    n_o = o_pad // tile_o

    # ---- grid ordering: read the larger operand from HBM only once ----
    swap = (n_b > 1) and (o_pad > b_pad)
    if swap:
        grid = (n_o, n_b)
        x_map = lambda a, b: (b, 0)
        w_map = lambda a, b: (a, 0)
        row_map = lambda a, b: (b, 0)
        col_map = lambda a, b: (0, a)
        out_map = lambda a, b: (b, a)
    else:
        grid = (n_b, n_o)
        x_map = lambda a, b: (a, 0)
        w_map = lambda a, b: (b, 0)
        row_map = lambda a, b: (a, 0)
        col_map = lambda a, b: (0, b)
        out_map = lambda a, b: (a, b)

    # ---- pad + cast (skip the padded copy entirely when already aligned) ----
    def _pad2(a, r, c):
        return a if (r == 0 and c == 0) else jnp.pad(a, ((0, r), (0, c)))

    x_bf = _pad2(x32.astype(jnp.bfloat16), b_pad - B, d_pad - D)
    v_bf = _pad2(v32.astype(jnp.bfloat16), o_pad - O, d_pad - D)
    row_p = _pad2(row_scale, b_pad - B, 0)
    col_p = _pad2(col_scale, 0, o_pad - O)

    # ---- VMEM limit from actual (double-buffered) tile bytes ----
    tile_bytes = (tile_b * d_pad * 2 + tile_o * d_pad * 2      # bf16 operands
                  + tile_b * tile_o * 4                        # f32 output
                  + (tile_b + tile_o) * 4 * 128)               # padded scale vecs
    vmem_limit = int(min(vmem_ceiling,
                         max(16 * 1024 * 1024, 2 * tile_bytes + (4 << 20))))

    out = pl.pallas_call(
        _dist_linear_kernel,
        out_shape=jax.ShapeDtypeStruct((b_pad, o_pad), jnp.float32),
        grid_spec=pltpu.PrefetchScalarGridSpec(
            num_scalar_prefetch=0,
            grid=grid,
            in_specs=[
                pl.BlockSpec((tile_b, d_pad), x_map),     # x tile (bf16)
                pl.BlockSpec((tile_o, d_pad), w_map),     # weight tile (bf16)
                pl.BlockSpec((tile_b, 1), row_map),       # scale/(||x||+eps)
                pl.BlockSpec((1, tile_o), col_map),       # g/||v||
            ],
            out_specs=pl.BlockSpec((tile_b, tile_o), out_map),
        ),
        compiler_params=pltpu.CompilerParams(
            dimension_semantics=("parallel", "parallel"),
            vmem_limit_bytes=vmem_limit,
        ),
    )(x_bf, v_bf, row_p, col_p)

    return out[:B, :O]


def _reference(x, weight_v, weight_g):
    scale = 2.0 if weight_v.shape[0] <= 200 else 10.0
    x_n = x / (jnp.linalg.norm(x, axis=1, keepdims=True) + 1e-5)
    w = weight_g * weight_v / jnp.linalg.norm(weight_v, axis=1, keepdims=True)
    return scale * (x_n @ w.T)


if __name__ == "__main__":
    key = jax.random.PRNGKey(0)

    def run_case(case_key, B, indim, outdim):
        kx, kw = jax.random.split(case_key)
        x = jax.random.normal(kx, (B, indim), dtype=jnp.float32)
        # Deterministic init mimicking nn.Linear kaiming-uniform bound, then
        # WeightNorm.apply: v = original weight, g = row norms of v.
        bound = 1.0 / (indim ** 0.5)
        weight_v = jax.random.uniform(
            kw, (outdim, indim), jnp.float32, minval=-bound, maxval=bound)
        weight_g = jnp.linalg.norm(weight_v, axis=1, keepdims=True)  # [outdim,1]

        scores = dist_linear(x, weight_v, weight_g)
        jax.block_until_ready(scores)

        ref = _reference(x, weight_v, weight_g)
        assert scores.shape == (B, outdim)
        # bf16 MXU operands => compare at bf16-level tolerance.
        err = float(jnp.max(jnp.abs(scores - ref)))
        assert jnp.allclose(scores, ref, atol=3e-2, rtol=3e-2), err

    k1, k2, k3 = jax.random.split(key, 3)
    run_case(k1, 8, 32, 64)       # scale=2, single-tile grid
    run_case(k2, 16, 160, 384)    # scale=10, O split into 2 tiles (megacore)
    run_case(k3, 544, 32, 1100)   # scale=10, multi B tiles, O-outer grid order

    print("KERNEL_OK")
</pallas_src>

<mosaic_0001>
module attributes {stable_mosaic.version = 11 : i64} {
  func.func @_dist_linear_kernel(%arg0: i32, %arg1: i32, %arg2: memref<8x128xbf16, #tpu.memory_space<vmem>>, %arg3: memref<128x128xbf16, #tpu.memory_space<vmem>>, %arg4: memref<8x1xf32, #tpu.memory_space<vmem>>, %arg5: memref<1x128xf32, #tpu.memory_space<vmem>>, %arg6: memref<8x128xf32, #tpu.memory_space<vmem>>) attributes {dimension_semantics = [#tpu.dimension_semantics<parallel>, #tpu.dimension_semantics<parallel>], iteration_bounds = array<i64: 1, 1>, scalar_prefetch = 0 : i64, scratch_operands = 0 : i64, tpu.core_type = #tpu.core_type<tc>, window_params = [{transform_indices = @transform_0, window_bounds = array<i64: 8, 128>}, {transform_indices = @transform_1, window_bounds = array<i64: 128, 128>}, {transform_indices = @transform_2, window_bounds = array<i64: 8, 1>}, {transform_indices = @transform_3, window_bounds = array<i64: 1, 128>}, {transform_indices = @transform_4, window_bounds = array<i64: 8, 128>}]} {
    %c0 = arith.constant 0 : index
    %c0_0 = arith.constant 0 : index
    %0 = vector.load %arg2[%c0, %c0_0] : memref<8x128xbf16, #tpu.memory_space<vmem>>, vector<8x128xbf16>
    %c0_1 = arith.constant 0 : index
    %c0_2 = arith.constant 0 : index
    %1 = vector.load %arg3[%c0_1, %c0_2] : memref<128x128xbf16, #tpu.memory_space<vmem>>, vector<128x128xbf16>
    %cst = arith.constant dense<0.000000e+00> : vector<8x128xf32>
    %2 = tpu.matmul %0, %1, %cst {dimension_numbers = #tpu.dot_dimension_numbers<[1], [1], [0], [0], [0, 0, 1, 0], [], []>} : vector<8x128xbf16>, vector<128x128xbf16>, vector<8x128xf32> -> vector<8x128xf32>
    %c0_3 = arith.constant 0 : index
    %c0_4 = arith.constant 0 : index
    %3 = vector.load %arg4[%c0_3, %c0_4] : memref<8x1xf32, #tpu.memory_space<vmem>>, vector<8x1xf32>
    %4 = vector.broadcast %3 : vector<8x1xf32> to vector<8x128xf32>
    %5 = arith.mulf %2, %4 : vector<8x128xf32>
    %c0_5 = arith.constant 0 : index
    %c0_6 = arith.constant 0 : index
    %6 = vector.load %arg5[%c0_5, %c0_6] : memref<1x128xf32, #tpu.memory_space<vmem>>, vector<1x128xf32>
    %7 = vector.broadcast %6 : vector<1x128xf32> to vector<8x128xf32>
    %8 = arith.mulf %5, %7 : vector<8x128xf32>
    %c0_7 = arith.constant 0 : index
    %c0_8 = arith.constant 0 : index
    %9 = vector.load %arg6[%c0_7, %c0_8] : memref<8x128xf32, #tpu.memory_space<vmem>>, vector<8x128xf32>
    tpu.vector_store %arg6[%c0_7, %c0_8], %8 {strides = array<i32>} : memref<8x128xf32, #tpu.memory_space<vmem>>, vector<8x128xf32>,
    return
  }
  func.func @transform_0(%arg0: i32, %arg1: i32) -> (i32, i32) {
    %c0_i32 = arith.constant 0 : i32
    %c0_i32_0 = arith.constant 0 : i32
    return %arg0, %c0_i32 : i32, i32
  }
  func.func @transform_1(%arg0: i32, %arg1: i32) -> (i32, i32) {
    %c0_i32 = arith.constant 0 : i32
    %c0_i32_0 = arith.constant 0 : i32
    return %arg1, %c0_i32 : i32, i32
  }
  func.func @transform_2(%arg0: i32, %arg1: i32) -> (i32, i32) {
    %c0_i32 = arith.constant 0 : i32
    %c0_i32_0 = arith.constant 0 : i32
    return %arg0, %c0_i32 : i32, i32
  }
  func.func @transform_3(%arg0: i32, %arg1: i32) -> (i32, i32) {
    %c0_i32 = arith.constant 0 : i32
    %c0_i32_0 = arith.constant 0 : i32
    return %c0_i32, %arg1 : i32, i32
  }
  func.func @transform_4(%arg0: i32, %arg1: i32) -> (i32, i32) {
    %c0_i32 = arith.constant 0 : i32
    return %arg0, %arg1 : i32, i32
  }
}

</mosaic_0001>

<llo_original>
// kernel: tpu_custom_call.1
$region0: #{tpu_custom_call.1}
  #allocation0 [shape = 'u32[]', space=smem, size = 0x4, offset = 0x4, fixed_abs, tag = 'smem constant byte address 0x4 - core index']
  #allocation1 [shape = 'u32[144,128]{1,0:T(1,128)}', space=vmem, size = 0x12000, scoped, tag = 'internal scratch']
  %s0 = inlined_call_operand.vmem [shape: bf16[8,128], index: 0, kind: input, shape index: {}]
  %s1 = inlined_call_operand.hbm [shape: bf16[128,128], index: 1, kind: input, shape index: {}]
  %s2 = inlined_call_operand.vmem [shape: f32[8,1], index: 2, kind: input, shape index: {}]
  %s3 = inlined_call_operand.vmem [shape: f32[1,128], index: 3, kind: input, shape index: {}]
  %s4 = inlined_call_operand.hbm [shape: f32[8,128], index: 4, kind: output, shape index: {}]
  %s5 = sld [smem:[#allocation0]]
  $region30: #{tpu_custom_call.1} parent=0
    _
  %s7 = ssub.s32 1, %s5
  %s8 = scalar_select 0, %s7, %s5
  $region1: #{tpu_custom_call.1} parent=0
    #allocation2 [shape = 'u8[32768]{0}', space=vmem, size = 0x8000, scoped, tag = 'input window, operand 1, single buffered']
    #allocation3 [shape = 's32[1]{0}', space=sflag, size = 0x4, scoped, tag = 'scoped memory for tpu_custom_call.1']
    #allocation4 [shape = 's32[1]{0}', space=sflag, size = 0x4, scoped, tag = 'scoped memory for tpu_custom_call.1']
    #allocation5 [shape = 'u8[4096]{0}', space=vmem, size = 0x1000, scoped, tag = 'output window, operand 0, single buffered']
    %9 = vsyncpa [#allocation3], 0
    %10 = vsyncpa [#allocation4], 0
    // Predicated region
    $region2: #{tpu_custom_call.1} parent=1 // pred_check
      _
    $region3: #{tpu_custom_call.1} parent=1 // pred_check_branch
      %12 = sbr.rel (0) target = $region5
    $region4: #{tpu_custom_call.1} parent=1 // pred_region
      _
    $region5: #{tpu_custom_call.1} parent=1 // pred_fallthru
      _
    // Predicated region
    $region6: #{tpu_custom_call.1} parent=1 // pred_check
      _
    $region7: #{tpu_custom_call.1} parent=1 // pred_check_branch
      %14 = sbr.rel (0) target = $region9
    $region8: #{tpu_custom_call.1} parent=1 // pred_region
      %s16 = ssub.s32 1024, 1024
      %17 = vsyncadd [#allocation3], %s16
      %s18 = sshll.u32 [#allocation2], 4
      %s19 = int_to_ptr.vmem [resolvable:$true] %s18
      %24 = dma.hbm_to_vmem [thread:$0]  %s1, 1024, %s19, [#allocation3], 64, 64, 4
    $region9: #{tpu_custom_call.1} parent=1 // pred_fallthru
      _
    // Predicated region
    $region10: #{tpu_custom_call.1} parent=1 // pred_check
      _
    $region11: #{tpu_custom_call.1} parent=1 // pred_check_branch
      %26 = sbr.rel (0) target = $region13
    $region12: #{tpu_custom_call.1} parent=1 // pred_region
      _
    $region13: #{tpu_custom_call.1} parent=1 // pred_fallthru
      _
    // Predicated region
    $region14: #{tpu_custom_call.1} parent=1 // pred_check
      _
    $region15: #{tpu_custom_call.1} parent=1 // pred_check_branch
      %28 = sbr.rel (0) target = $region17
    $region16: #{tpu_custom_call.1} parent=1 // pred_region
      _
    $region17: #{tpu_custom_call.1} parent=1 // pred_fallthru
      _
    // Predicated region
    $region18: #{tpu_custom_call.1} parent=1 // pred_check
      _
    $region19: #{tpu_custom_call.1} parent=1 // pred_check_branch
      %30 = sbr.rel (0) target = $region21
    $region20: #{tpu_custom_call.1} parent=1 // pred_region
      %31 = dma.done [#allocation3], 1024
    $region21: #{tpu_custom_call.1} parent=1 // pred_fallthru
      _
    %v33 = vld [vmem:[%s0] sm:$0xf]
    %v34 = vld [vmem:[#allocation2] sm:$0xf]
    %v35 = vld [vmem:[#allocation2 + $0x4] sm:$0xf]
    %v36 = vld [vmem:[#allocation2 + $0x8] sm:$0xf]
    %v37 = vld [vmem:[#allocation2 + $0xc] sm:$0xf]
    %v38 = vld [vmem:[#allocation2 + $0x10] sm:$0xf]
    %v39 = vld [vmem:[#allocation2 + $0x14] sm:$0xf]
    %v40 = vld [vmem:[#allocation2 + $0x18] sm:$0xf]
    %v41 = vld [vmem:[#allocation2 + $0x1c] sm:$0xf]
    %v42 = vld [vmem:[#allocation2 + $0x20] sm:$0xf]
    %v43 = vld [vmem:[#allocation2 + $0x24] sm:$0xf]
    %v44 = vld [vmem:[#allocation2 + $0x28] sm:$0xf]
    %v45 = vld [vmem:[#allocation2 + $0x2c] sm:$0xf]
    %v46 = vld [vmem:[#allocation2 + $0x30] sm:$0xf]
    %v47 = vld [vmem:[#allocation2 + $0x34] sm:$0xf]
    %v48 = vld [vmem:[#allocation2 + $0x38] sm:$0xf]
    %v49 = vld [vmem:[#allocation2 + $0x3c] sm:$0xf]
    %v66 = vunpack.c.l.b16 %v34
    %v67 = vunpack.c.l.b16 %v35
    %v68 = vunpack.c.l.b16 %v36
    %v69 = vunpack.c.l.b16 %v37
    %v70 = vunpack.c.l.b16 %v38
    %v71 = vunpack.c.l.b16 %v39
    %v72 = vunpack.c.l.b16 %v40
    %v73 = vunpack.c.l.b16 %v41
    %v74 = vunpack.c.l.b16 %v42
    %v75 = vunpack.c.l.b16 %v43
    %v76 = vunpack.c.l.b16 %v44
    %v77 = vunpack.c.l.b16 %v45
    %v78 = vunpack.c.l.b16 %v46
    %v79 = vunpack.c.l.b16 %v47
    %v80 = vunpack.c.l.b16 %v48
    %v81 = vunpack.c.l.b16 %v49
    %v82 = vpack.c.b16 %v67, %v66
    %v83 = vpack.c.b16 %v69, %v68
    %v84 = vpack.c.b16 %v71, %v70
    %v85 = vpack.c.b16 %v73, %v72
    %v86 = vpack.c.b16 %v75, %v74
    %v87 = vpack.c.b16 %v77, %v76
    %v88 = vpack.c.b16 %v79, %v78
    %v89 = vpack.c.b16 %v81, %v80
    %98 = vmatprep.subr.bf16.mxu0 0
    %99 = vmatpush1.bf16.xpose.msra.mxu0 %v82
    %100 = vmatprep.subr.bf16.mxu0 0
    %101 = vmatpush1.bf16.xpose.msra.mxu0 %v83
    %102 = vmatprep.subr.bf16.mxu0 0
    %103 = vmatpush1.bf16.xpose.msra.mxu0 %v84
    %104 = vmatprep.subr.bf16.mxu0 0
    %105 = vmatpush1.bf16.xpose.msra.mxu0 %v85
    %106 = vmatprep.subr.bf16.mxu0 0
    %107 = vmatpush1.bf16.xpose.msra.mxu0 %v86
    %108 = vmatprep.subr.bf16.mxu0 0
    %109 = vmatpush1.bf16.xpose.msra.mxu0 %v87
    %110 = vmatprep.subr.bf16.mxu0 0
    %111 = vmatpush1.bf16.xpose.msra.mxu0 %v88
    %112 = vmatprep.subr.bf16.mxu0 0
    %113 = vmatpush1.bf16.xpose.msra.mxu0 %v89
    %114 = vmatprep.subr.bf16.mxu0 0
    %115 = vmatpush1.bf16.xpose.msra.mxu0 0
    %116 = vmatprep.subr.bf16.mxu0 0
    %117 = vmatpush1.bf16.xpose.msra.mxu0 0
    %118 = vmatprep.subr.bf16.mxu0 0
    %119 = vmatpush1.bf16.xpose.msra.mxu0 0
    %120 = vmatprep.subr.bf16.mxu0 0
    %121 = vmatpush1.bf16.xpose.msra.mxu0 0
    %122 = vmatprep.subr.bf16.mxu0 0
    %123 = vmatpush1.bf16.xpose.msra.mxu0 0
    %124 = vmatprep.subr.bf16.mxu0 0
    %125 = vmatpush1.bf16.xpose.msra.mxu0 0
    %126 = vmatprep.subr.bf16.mxu0 0
    %127 = vmatpush1.bf16.xpose.msra.mxu0 0
    %128 = vmatprep.subr.bf16.mxu0 0
    %129 = vmatpush1.bf16.xpose.msra.mxu0 0
    %130 = vmatprep.mubr.bf16.mxu0 0
    %131 = vmatmul.mubr.bf16.gmra.mrb[0].mxu0 %v33
    %v132 = vpop.f32.mrb[0].mxu0
    %v133 = vadd.f32 0.0, %v132
    %v134 = vpop.f32.mrb[0].mxu0
    %v135 = vpop.f32.mrb[0].mxu0
    %v136 = vpop.f32.mrb[0].mxu0
    %137 = vdwg.mxu0
    %v138 = vld [vmem:[%s2] sm:$0xff]
    %140 = vset.pattern.permute.xlu0 0
    %141 = vperm.xlu0 %140, %v138
    %v142 = vpop.permute.xlu0 %141
    %v144 = vmul.f32 %v133, %v142
    %v145 = vld [vmem:[%s3] sm:$0x1]
    %v147 = vlaneseq
    %v148 = vshrl.u32 %v147, 7
    %v149 = vsub.s32 0, %v148
    %v150 = vrot.slane %v145, %v149
    %v152 = vmul.f32 %v144, %v150
    %153 = vst [vmem:[#allocation5] sm:$0xff] %v152
    // Predicated region
    $region22: #{tpu_custom_call.1} parent=1 // pred_check
      _
    $region23: #{tpu_custom_call.1} parent=1 // pred_check_branch
      %155 = sbr.rel (0) target = $region25
    $region24: #{tpu_custom_call.1} parent=1 // pred_region
      %s157 = ssub.s32 128, 128
      %158 = vsyncadd [#allocation4], %s157
      %s160 = sshll.u32 [#allocation5], 4
      %s161 = int_to_ptr.vmem [resolvable:$true] %s160
      %163 = dma.vmem_to_hbm [thread:$0]  %s161, 128, %s4, [#allocation4]
    $region25: #{tpu_custom_call.1} parent=1 // pred_fallthru
      _
    // Predicated region
    $region26: #{tpu_custom_call.1} parent=1 // pred_check
      _
    $region27: #{tpu_custom_call.1} parent=1 // pred_check_branch
      %165 = sbr.rel (0) target = $region29
    $region28: #{tpu_custom_call.1} parent=1 // pred_region
      %166 = dma.done [#allocation4], 128
    $region29: #{tpu_custom_call.1} parent=1 // pred_fallthru
      _
    %167 = vsyncpa [#allocation3], 1
    %168 = vsyncpa [#allocation4], 1

</llo_original>
